<compile_context>
chip_gen: v7x
topology: tpu7x:2x2x1
jax: 0.10.0
libtpu: 0.0.40
codegen_flags: <defaults>
</compile_context>

<pallas_src>
import functools

import jax
import jax.numpy as jnp
from jax.experimental import pallas as pl
from jax.experimental.pallas import tpu as pltpu


Z_DIM = 2
INPUT_DIM = 42  # kp_direct=False
# (fan_in, fan_out) in network order: encoder then decoder.
LAYER_DIMS = [(INPUT_DIM, 24), (24, 12), (12, 7), (7, Z_DIM),
              (Z_DIM, 7), (7, 12), (12, 24), (24, INPUT_DIM)]

_NT = (((1,), (1,)), ((), ()))   # contract lhs dim 1 with rhs dim 1
_TN = (((0,), (0,)), ((), ()))   # contract lhs dim 0 with rhs dim 0


def _ae_kernel(x_ref,
               w1, b1, w2, b2, w3, b3, wm, bm, w6, b6, w7, b7, w8t, b8,
               out_ref):
    """x block is native (TB, 42); intermediates are feature-major (features, TB)."""
    x = x_ref[...]                                                  # (TB, 42)

    # Layer 1 (42->24): contract feature dims -> feature-major (24, TB).
    h = jax.lax.dot_general(w1[...], x, _NT,
                            preferred_element_type=jnp.float32) + b1[...]
    h = jnp.maximum(h, 0.0)

    def fm_layer(w_ref, b_ref, h):
        # (out, in) @ (in, TB) + (out, 1) -> (out, TB)
        return jnp.dot(w_ref[...], h,
                       preferred_element_type=jnp.float32) + b_ref[...]

    h = jnp.maximum(fm_layer(w2, b2, h), 0.0)                       # (12, TB)
    h = jnp.maximum(fm_layer(w3, b3, h), 0.0)                       # (7, TB)
    # Fused latent pair (7->2->7; no nonlinearity in between), then ReLU.
    h = jnp.maximum(fm_layer(wm, bm, h), 0.0)                       # (7, TB)
    h = jnp.maximum(fm_layer(w6, b6, h), 0.0)                       # (12, TB)
    h = jnp.maximum(fm_layer(w7, b7, h), 0.0)                       # (24, TB)

    # Last layer (24->42): contract feature dims -> native (TB, 42), then sigmoid.
    y = jax.lax.dot_general(h, w8t[...], _TN,
                            preferred_element_type=jnp.float32) + b8[...]
    out_ref[...] = jax.nn.sigmoid(y)


def init_params(key):
    """PyTorch nn.Linear-style init: W (out, in), b (out,), uniform +/-1/sqrt(fan_in)."""
    params = []
    for fan_in, fan_out in LAYER_DIMS:
        key, kw, kb = jax.random.split(key, 3)
        bound = 1.0 / jnp.sqrt(jnp.float32(fan_in))
        w = jax.random.uniform(kw, (fan_out, fan_in), jnp.float32, -bound, bound)
        b = jax.random.uniform(kb, (fan_out,), jnp.float32, -bound, bound)
        params += [w, b]
    return params


def _round_up(x, m):
    return ((x + m - 1) // m) * m


def _cdiv(a, b):
    return (a + b - 1) // b


def _choose_tile(batch, batch_tile):
    """128-aligned batch tile; ragged tails handled by OOB block semantics."""
    tb = max(128, _round_up(int(batch_tile), 128))
    if batch <= 256:
        return batch, 1                  # single block == full array dims (always legal)
    if batch <= tb:
        # Split into ~2 tiles so the 'parallel' axis can feed both TCs on v7x.
        tb = min(tb, _round_up(_cdiv(batch, 2), 128))
    return tb, _cdiv(batch, tb)


@functools.partial(jax.jit, static_argnames=("batch_tile",))
def whole_body_ae_forward(x, *params, batch_tile=4096):
    """x: (batch, INPUT_DIM) f32; params: 8x (W (out,in), b (out,)) in network order."""
    batch = x.shape[0]
    tb, grid = _choose_tile(batch, batch_tile)

    (we1, be1, we2, be2, we3, be3, we4, be4,
     wd1, bd1, wd2, bd2, wd3, bd3, wd4, bd4) = params

    # Fuse the two linears around the latent (no nonlinearity between them):
    #   Wd1 (We4 h + be4) + bd1 == (Wd1 We4) h + (Wd1 be4 + bd1)
    wc = wd1 @ we4                        # (7, 7)
    bc = wd1 @ be4 + bd1                  # (7,)

    kernel_params = [
        we1, be1.reshape(-1, 1),
        we2, be2.reshape(-1, 1),
        we3, be3.reshape(-1, 1),
        wc, bc.reshape(-1, 1),
        wd2, bd2.reshape(-1, 1),
        wd3, bd3.reshape(-1, 1),
        wd4.T, bd4.reshape(1, -1),        # last layer pre-transposed: (24, 42), (1, 42)
    ]

    # Activation stream: blocked along the batch axis (auto double-buffered pipeline).
    x_spec = pl.BlockSpec((tb, INPUT_DIM), lambda i: (i, 0))
    out_spec = pl.BlockSpec((tb, INPUT_DIM), lambda i: (i, 0))
    # Params: full-array blocks, constant index -> resident in VMEM across grid steps.
    param_specs = [pl.BlockSpec(p.shape, lambda i: (0, 0)) for p in kernel_params]

    return pl.pallas_call(
        _ae_kernel,
        out_shape=jax.ShapeDtypeStruct((batch, INPUT_DIM), jnp.float32),
        grid=(grid,),
        in_specs=[x_spec] + param_specs,
        out_specs=out_spec,
        compiler_params=pltpu.CompilerParams(
            dimension_semantics=("parallel",),
            vmem_limit_bytes=48 * 1024 * 1024),
    )(x, *kernel_params)


def reference_forward(x, params):
    """Pure-JAX reference in PyTorch convention (y = x @ W.T + b), unfused."""
    h = x
    n_layers = len(LAYER_DIMS)
    for li in range(n_layers):
        w, b = params[2 * li], params[2 * li + 1]
        h = h @ w.T + b
        if li == n_layers - 1:
            h = jax.nn.sigmoid(h)
        elif li != 3:  # latent layer (index 3) has no activation
            h = jnp.maximum(h, 0.0)
    return h


if __name__ == "__main__":
    key = jax.random.PRNGKey(0)
    key, kx = jax.random.split(key)
    params = init_params(key)

    # Small test: single-block path (batch <= 256, block == full array dims).
    batch = 8
    x = jax.random.normal(kx, (batch, INPUT_DIM), jnp.float32)
    out = jax.block_until_ready(whole_body_ae_forward(x, *params))
    ref = reference_forward(x, params)
    assert out.shape == (batch, INPUT_DIM), out.shape
    assert jnp.allclose(out, ref, atol=2e-5, rtol=1e-4), "mismatch vs reference (batch=8)"

    # Multi-block grid with a ragged OOB-masked tail: batch=300, 128-wide batch tile.
    key, kx2 = jax.random.split(key)
    x2 = jax.random.normal(kx2, (300, INPUT_DIM), jnp.float32)
    out2 = jax.block_until_ready(whole_body_ae_forward(x2, *params, batch_tile=128))
    ref2 = reference_forward(x2, params)
    assert out2.shape == (300, INPUT_DIM), out2.shape
    assert jnp.allclose(out2, ref2, atol=2e-5, rtol=1e-4), "mismatch vs reference (batch=300)"

    print("KERNEL_OK")
</pallas_src>

<mosaic_0001>
module attributes {stable_mosaic.version = 11 : i64} {
  func.func @_ae_kernel(%arg0: i32, %arg1: memref<8x42xf32, #tpu.memory_space<vmem>>, %arg2: memref<24x42xf32, #tpu.memory_space<vmem>>, %arg3: memref<24x1xf32, #tpu.memory_space<vmem>>, %arg4: memref<12x24xf32, #tpu.memory_space<vmem>>, %arg5: memref<12x1xf32, #tpu.memory_space<vmem>>, %arg6: memref<7x12xf32, #tpu.memory_space<vmem>>, %arg7: memref<7x1xf32, #tpu.memory_space<vmem>>, %arg8: memref<7x7xf32, #tpu.memory_space<vmem>>, %arg9: memref<7x1xf32, #tpu.memory_space<vmem>>, %arg10: memref<12x7xf32, #tpu.memory_space<vmem>>, %arg11: memref<12x1xf32, #tpu.memory_space<vmem>>, %arg12: memref<24x12xf32, #tpu.memory_space<vmem>>, %arg13: memref<24x1xf32, #tpu.memory_space<vmem>>, %arg14: memref<24x42xf32, #tpu.memory_space<vmem>>, %arg15: memref<1x42xf32, #tpu.memory_space<vmem>>, %arg16: memref<8x42xf32, #tpu.memory_space<vmem>>) attributes {dimension_semantics = [#tpu.dimension_semantics<parallel>], iteration_bounds = array<i64: 1>, scalar_prefetch = 0 : i64, scratch_operands = 0 : i64, tpu.core_type = #tpu.core_type<tc>, window_params = [{transform_indices = @transform_0, window_bounds = array<i64: 8, 42>}, {pipeline_mode = #tpu.pipeline_mode<synchronous>, transform_indices = @transform_1, window_bounds = array<i64: 24, 42>}, {pipeline_mode = #tpu.pipeline_mode<synchronous>, transform_indices = @transform_2, window_bounds = array<i64: 24, 1>}, {pipeline_mode = #tpu.pipeline_mode<synchronous>, transform_indices = @transform_3, window_bounds = array<i64: 12, 24>}, {pipeline_mode = #tpu.pipeline_mode<synchronous>, transform_indices = @transform_4, window_bounds = array<i64: 12, 1>}, {pipeline_mode = #tpu.pipeline_mode<synchronous>, transform_indices = @transform_5, window_bounds = array<i64: 7, 12>}, {pipeline_mode = #tpu.pipeline_mode<synchronous>, transform_indices = @transform_6, window_bounds = array<i64: 7, 1>}, {pipeline_mode = #tpu.pipeline_mode<synchronous>, transform_indices = @transform_7, window_bounds = array<i64: 7, 7>}, {pipeline_mode = #tpu.pipeline_mode<synchronous>, transform_indices = @transform_8, window_bounds = array<i64: 7, 1>}, {pipeline_mode = #tpu.pipeline_mode<synchronous>, transform_indices = @transform_9, window_bounds = array<i64: 12, 7>}, {pipeline_mode = #tpu.pipeline_mode<synchronous>, transform_indices = @transform_10, window_bounds = array<i64: 12, 1>}, {pipeline_mode = #tpu.pipeline_mode<synchronous>, transform_indices = @transform_11, window_bounds = array<i64: 24, 12>}, {pipeline_mode = #tpu.pipeline_mode<synchronous>, transform_indices = @transform_12, window_bounds = array<i64: 24, 1>}, {pipeline_mode = #tpu.pipeline_mode<synchronous>, transform_indices = @transform_13, window_bounds = array<i64: 24, 42>}, {pipeline_mode = #tpu.pipeline_mode<synchronous>, transform_indices = @transform_14, window_bounds = array<i64: 1, 42>}, {transform_indices = @transform_15, window_bounds = array<i64: 8, 42>}]} {
    %c0 = arith.constant 0 : index
    %c0_0 = arith.constant 0 : index
    %0 = vector.load %arg1[%c0, %c0_0] : memref<8x42xf32, #tpu.memory_space<vmem>>, vector<8x42xf32>
    %c0_1 = arith.constant 0 : index
    %c0_2 = arith.constant 0 : index
    %1 = vector.load %arg2[%c0_1, %c0_2] : memref<24x42xf32, #tpu.memory_space<vmem>>, vector<24x42xf32>
    %cst = arith.constant dense<0.000000e+00> : vector<24x8xf32>
    %2 = tpu.matmul %1, %0, %cst {dimension_numbers = #tpu.dot_dimension_numbers<[1], [1], [0], [0], [0, 0, 1, 0], [], []>} : vector<24x42xf32>, vector<8x42xf32>, vector<24x8xf32> -> vector<24x8xf32>
    %c0_3 = arith.constant 0 : index
    %c0_4 = arith.constant 0 : index
    %3 = vector.load %arg3[%c0_3, %c0_4] : memref<24x1xf32, #tpu.memory_space<vmem>>, vector<24x1xf32>
    %4 = vector.broadcast %3 : vector<24x1xf32> to vector<24x8xf32>
    %5 = arith.addf %2, %4 : vector<24x8xf32>
    %cst_5 = arith.constant 0.000000e+00 : f32
    %6 = vector.broadcast %cst_5 : f32 to vector<24x8xf32>
    %7 = arith.maximumf %5, %6 : vector<24x8xf32>
    %c0_6 = arith.constant 0 : index
    %c0_7 = arith.constant 0 : index
    %8 = vector.load %arg4[%c0_6, %c0_7] : memref<12x24xf32, #tpu.memory_space<vmem>>, vector<12x24xf32>
    %cst_8 = arith.constant dense<0.000000e+00> : vector<12x8xf32>
    %9 = tpu.matmul %8, %7, %cst_8 {dimension_numbers = #tpu.dot_dimension_numbers<[1], [0], [0], [1], [0, 0, 1, 1], [], []>} : vector<12x24xf32>, vector<24x8xf32>, vector<12x8xf32> -> vector<12x8xf32>
    %c0_9 = arith.constant 0 : index
    %c0_10 = arith.constant 0 : index
    %10 = vector.load %arg5[%c0_9, %c0_10] : memref<12x1xf32, #tpu.memory_space<vmem>>, vector<12x1xf32>
    %11 = vector.broadcast %10 : vector<12x1xf32> to vector<12x8xf32>
    %12 = arith.addf %9, %11 : vector<12x8xf32>
    %cst_11 = arith.constant 0.000000e+00 : f32
    %13 = vector.broadcast %cst_11 : f32 to vector<12x8xf32>
    %14 = arith.maximumf %12, %13 : vector<12x8xf32>
    %c0_12 = arith.constant 0 : index
    %c0_13 = arith.constant 0 : index
    %15 = vector.load %arg6[%c0_12, %c0_13] : memref<7x12xf32, #tpu.memory_space<vmem>>, vector<7x12xf32>
    %cst_14 = arith.constant dense<0.000000e+00> : vector<7x8xf32>
    %16 = tpu.matmul %15, %14, %cst_14 {dimension_numbers = #tpu.dot_dimension_numbers<[1], [0], [0], [1], [0, 0, 1, 1], [], []>} : vector<7x12xf32>, vector<12x8xf32>, vector<7x8xf32> -> vector<7x8xf32>
    %c0_15 = arith.constant 0 : index
    %c0_16 = arith.constant 0 : index
    %17 = vector.load %arg7[%c0_15, %c0_16] : memref<7x1xf32, #tpu.memory_space<vmem>>, vector<7x1xf32>
    %18 = vector.broadcast %17 : vector<7x1xf32> to vector<7x8xf32>
    %19 = arith.addf %16, %18 : vector<7x8xf32>
    %cst_17 = arith.constant 0.000000e+00 : f32
    %20 = vector.broadcast %cst_17 : f32 to vector<7x8xf32>
    %21 = arith.maximumf %19, %20 : vector<7x8xf32>
    %c0_18 = arith.constant 0 : index
    %c0_19 = arith.constant 0 : index
    %22 = vector.load %arg8[%c0_18, %c0_19] : memref<7x7xf32, #tpu.memory_space<vmem>>, vector<7x7xf32>
    %cst_20 = arith.constant dense<0.000000e+00> : vector<7x8xf32>
    %23 = tpu.matmul %22, %21, %cst_20 {dimension_numbers = #tpu.dot_dimension_numbers<[1], [0], [0], [1], [0, 0, 1, 1], [], []>} : vector<7x7xf32>, vector<7x8xf32>, vector<7x8xf32> -> vector<7x8xf32>
    %c0_21 = arith.constant 0 : index
    %c0_22 = arith.constant 0 : index
    %24 = vector.load %arg9[%c0_21, %c0_22] : memref<7x1xf32, #tpu.memory_space<vmem>>, vector<7x1xf32>
    %25 = vector.broadcast %24 : vector<7x1xf32> to vector<7x8xf32>
    %26 = arith.addf %23, %25 : vector<7x8xf32>
    %cst_23 = arith.constant 0.000000e+00 : f32
    %27 = vector.broadcast %cst_23 : f32 to vector<7x8xf32>
    %28 = arith.maximumf %26, %27 : vector<7x8xf32>
    %c0_24 = arith.constant 0 : index
    %c0_25 = arith.constant 0 : index
    %29 = vector.load %arg10[%c0_24, %c0_25] : memref<12x7xf32, #tpu.memory_space<vmem>>, vector<12x7xf32>
    %cst_26 = arith.constant dense<0.000000e+00> : vector<12x8xf32>
    %30 = tpu.matmul %29, %28, %cst_26 {dimension_numbers = #tpu.dot_dimension_numbers<[1], [0], [0], [1], [0, 0, 1, 1], [], []>} : vector<12x7xf32>, vector<7x8xf32>, vector<12x8xf32> -> vector<12x8xf32>
    %c0_27 = arith.constant 0 : index
    %c0_28 = arith.constant 0 : index
    %31 = vector.load %arg11[%c0_27, %c0_28] : memref<12x1xf32, #tpu.memory_space<vmem>>, vector<12x1xf32>
    %32 = vector.broadcast %31 : vector<12x1xf32> to vector<12x8xf32>
    %33 = arith.addf %30, %32 : vector<12x8xf32>
    %cst_29 = arith.constant 0.000000e+00 : f32
    %34 = vector.broadcast %cst_29 : f32 to vector<12x8xf32>
    %35 = arith.maximumf %33, %34 : vector<12x8xf32>
    %c0_30 = arith.constant 0 : index
    %c0_31 = arith.constant 0 : index
    %36 = vector.load %arg12[%c0_30, %c0_31] : memref<24x12xf32, #tpu.memory_space<vmem>>, vector<24x12xf32>
    %cst_32 = arith.constant dense<0.000000e+00> : vector<24x8xf32>
    %37 = tpu.matmul %36, %35, %cst_32 {dimension_numbers = #tpu.dot_dimension_numbers<[1], [0], [0], [1], [0, 0, 1, 1], [], []>} : vector<24x12xf32>, vector<12x8xf32>, vector<24x8xf32> -> vector<24x8xf32>
    %c0_33 = arith.constant 0 : index
    %c0_34 = arith.constant 0 : index
    %38 = vector.load %arg13[%c0_33, %c0_34] : memref<24x1xf32, #tpu.memory_space<vmem>>, vector<24x1xf32>
    %39 = vector.broadcast %38 : vector<24x1xf32> to vector<24x8xf32>
    %40 = arith.addf %37, %39 : vector<24x8xf32>
    %cst_35 = arith.constant 0.000000e+00 : f32
    %41 = vector.broadcast %cst_35 : f32 to vector<24x8xf32>
    %42 = arith.maximumf %40, %41 : vector<24x8xf32>
    %c0_36 = arith.constant 0 : index
    %c0_37 = arith.constant 0 : index
    %43 = vector.load %arg14[%c0_36, %c0_37] : memref<24x42xf32, #tpu.memory_space<vmem>>, vector<24x42xf32>
    %cst_38 = arith.constant dense<0.000000e+00> : vector<8x42xf32>
    %44 = tpu.matmul %42, %43, %cst_38 {dimension_numbers = #tpu.dot_dimension_numbers<[0], [0], [1], [1], [0, 1, 1, 1], [], []>} : vector<24x8xf32>, vector<24x42xf32>, vector<8x42xf32> -> vector<8x42xf32>
    %c0_39 = arith.constant 0 : index
    %c0_40 = arith.constant 0 : index
    %45 = vector.load %arg15[%c0_39, %c0_40] : memref<1x42xf32, #tpu.memory_space<vmem>>, vector<1x42xf32>
    %46 = vector.broadcast %45 : vector<1x42xf32> to vector<8x42xf32>
    %47 = arith.addf %44, %46 : vector<8x42xf32>
    %48 = arith.negf %47 : vector<8x42xf32>
    %49 = math.exp %48 : vector<8x42xf32>
    %cst_41 = arith.constant 1.000000e+00 : f32
    %50 = vector.broadcast %cst_41 : f32 to vector<8x42xf32>
    %51 = arith.addf %50, %49 : vector<8x42xf32>
    %52 = arith.divf %50, %51 : vector<8x42xf32>
    %c0_42 = arith.constant 0 : index
    %c0_43 = arith.constant 0 : index
    %53 = vector.load %arg16[%c0_42, %c0_43] : memref<8x42xf32, #tpu.memory_space<vmem>>, vector<8x42xf32>
    tpu.vector_store %arg16[%c0_42, %c0_43], %52 {strides = array<i32>} : memref<8x42xf32, #tpu.memory_space<vmem>>, vector<8x42xf32>,
    return
  }
  func.func @transform_0(%arg0: i32) -> (i32, i32) {
    %c0_i32 = arith.constant 0 : i32
    %c0_i32_0 = arith.constant 0 : i32
    return %arg0, %c0_i32 : i32, i32
  }
  func.func @transform_1(%arg0: i32) -> (i32, i32) {
    %c0_i32 = arith.constant 0 : i32
    %c0_i32_0 = arith.constant 0 : i32
    %c0_i32_1 = arith.constant 0 : i32
    return %c0_i32, %c0_i32_0 : i32, i32
  }
  func.func @transform_2(%arg0: i32) -> (i32, i32) {
    %c0_i32 = arith.constant 0 : i32
    %c0_i32_0 = arith.constant 0 : i32
    %c0_i32_1 = arith.constant 0 : i32
    return %c0_i32, %c0_i32_0 : i32, i32
  }
  func.func @transform_3(%arg0: i32) -> (i32, i32) {
    %c0_i32 = arith.constant 0 : i32
    %c0_i32_0 = arith.constant 0 : i32
    %c0_i32_1 = arith.constant 0 : i32
    return %c0_i32, %c0_i32_0 : i32, i32
  }
  func.func @transform_4(%arg0: i32) -> (i32, i32) {
    %c0_i32 = arith.constant 0 : i32
    %c0_i32_0 = arith.constant 0 : i32
    %c0_i32_1 = arith.constant 0 : i32
    return %c0_i32, %c0_i32_0 : i32, i32
  }
  func.func @transform_5(%arg0: i32) -> (i32, i32) {
    %c0_i32 = arith.constant 0 : i32
    %c0_i32_0 = arith.constant 0 : i32
    %c0_i32_1 = arith.constant 0 : i32
    return %c0_i32, %c0_i32_0 : i32, i32
  }
  func.func @transform_6(%arg0: i32) -> (i32, i32) {
    %c0_i32 = arith.constant 0 : i32
    %c0_i32_0 = arith.constant 0 : i32
    %c0_i32_1 = arith.constant 0 : i32
    return %c0_i32, %c0_i32_0 : i32, i32
  }
  func.func @transform_7(%arg0: i32) -> (i32, i32) {
    %c0_i32 = arith.constant 0 : i32
    %c0_i32_0 = arith.constant 0 : i32
    %c0_i32_1 = arith.constant 0 : i32
    return %c0_i32, %c0_i32_0 : i32, i32
  }
  func.func @transform_8(%arg0: i32) -> (i32, i32) {
    %c0_i32 = arith.constant 0 : i32
    %c0_i32_0 = arith.constant 0 : i32
    %c0_i32_1 = arith.constant 0 : i32
    return %c0_i32, %c0_i32_0 : i32, i32
  }
  func.func @transform_9(%arg0: i32) -> (i32, i32) {
    %c0_i32 = arith.constant 0 : i32
    %c0_i32_0 = arith.constant 0 : i32
    %c0_i32_1 = arith.constant 0 : i32
    return %c0_i32, %c0_i32_0 : i32, i32
  }
  func.func @transform_10(%arg0: i32) -> (i32, i32) {
    %c0_i32 = arith.constant 0 : i32
    %c0_i32_0 = arith.constant 0 : i32
    %c0_i32_1 = arith.constant 0 : i32
    return %c0_i32, %c0_i32_0 : i32, i32
  }
  func.func @transform_11(%arg0: i32) -> (i32, i32) {
    %c0_i32 = arith.constant 0 : i32
    %c0_i32_0 = arith.constant 0 : i32
    %c0_i32_1 = arith.constant 0 : i32
    return %c0_i32, %c0_i32_0 : i32, i32
  }
  func.func @transform_12(%arg0: i32) -> (i32, i32) {
    %c0_i32 = arith.constant 0 : i32
    %c0_i32_0 = arith.constant 0 : i32
    %c0_i32_1 = arith.constant 0 : i32
    return %c0_i32, %c0_i32_0 : i32, i32
  }
  func.func @transform_13(%arg0: i32) -> (i32, i32) {
    %c0_i32 = arith.constant 0 : i32
    %c0_i32_0 = arith.constant 0 : i32
    %c0_i32_1 = arith.constant 0 : i32
    return %c0_i32, %c0_i32_0 : i32, i32
  }
  func.func @transform_14(%arg0: i32) -> (i32, i32) {
    %c0_i32 = arith.constant 0 : i32
    %c0_i32_0 = arith.constant 0 : i32
    %c0_i32_1 = arith.constant 0 : i32
    return %c0_i32, %c0_i32_0 : i32, i32
  }
  func.func @transform_15(%arg0: i32) -> (i32, i32) {
    %c0_i32 = arith.constant 0 : i32
    %c0_i32_0 = arith.constant 0 : i32
    return %arg0, %c0_i32 : i32, i32
  }
}

</mosaic_0001>

<llo_original>
// kernel: whole_body_ae_forward.1
$region0: #{whole_body_ae_forward.1}
  #allocation0 [shape = 'u32[]', space=smem, size = 0x4, offset = 0x4, fixed_abs, tag = 'smem constant byte address 0x4 - core index']
  #allocation1 [shape = 'u32[144,128]{1,0:T(1,128)}', space=vmem, size = 0x12000, scoped, tag = 'internal scratch']
  %s0 = inlined_call_operand.vmem [shape: f32[8,42], index: 0, kind: input, shape index: {}]
  %s1 = inlined_call_operand.vmem [shape: f32[24,42], index: 1, kind: input, shape index: {}]
  %s2 = inlined_call_operand.vmem [shape: f32[24,1], index: 2, kind: input, shape index: {}]
  %s3 = inlined_call_operand.vmem [shape: f32[12,24], index: 3, kind: input, shape index: {}]
  %s4 = inlined_call_operand.vmem [shape: f32[12,1], index: 4, kind: input, shape index: {}]
  %s5 = inlined_call_operand.vmem [shape: f32[7,12], index: 5, kind: input, shape index: {}]
  %s6 = inlined_call_operand.vmem [shape: f32[7,1], index: 6, kind: input, shape index: {}]
  %s7 = inlined_call_operand.vmem [shape: f32[7,7], index: 7, kind: input, shape index: {}]
  %s8 = inlined_call_operand.vmem [shape: f32[7,1], index: 8, kind: input, shape index: {}]
  %s9 = inlined_call_operand.vmem [shape: f32[12,7], index: 9, kind: input, shape index: {}]
  %s10 = inlined_call_operand.vmem [shape: f32[12,1], index: 10, kind: input, shape index: {}]
  %s11 = inlined_call_operand.vmem [shape: f32[24,12], index: 11, kind: input, shape index: {}]
  %s12 = inlined_call_operand.vmem [shape: f32[24,1], index: 12, kind: input, shape index: {}]
  %s13 = inlined_call_operand.vmem [shape: f32[24,42], index: 13, kind: input, shape index: {}]
  %s14 = inlined_call_operand.vmem [shape: f32[1,42], index: 14, kind: input, shape index: {}]
  %s15 = inlined_call_operand.hbm [shape: f32[8,42], index: 15, kind: output, shape index: {}]
  %s16 = sld [smem:[#allocation0]]
  $region70: #{whole_body_ae_forward.1} parent=0
    _
  %s18 = ssub.s32 1, %s16
  %s19 = scalar_select 0, %s18, %s16
  $region1: #{whole_body_ae_forward.1} parent=0
    #allocation2 [shape = 'u8[4096]{0}', space=vmem, size = 0x1000, scoped, tag = 'output window, operand 0, single buffered']
    #allocation3 [shape = 's32[1]{0}', space=sflag, size = 0x4, scoped, tag = 'scoped memory for whole_body_ae_forward.1']
    %20 = vsyncpa [#allocation3], 0
    // Predicated region
    $region2: #{whole_body_ae_forward.1} parent=1 // pred_check
      _
    $region3: #{whole_body_ae_forward.1} parent=1 // pred_check_branch
      %22 = sbr.rel (0) target = $region5
    $region4: #{whole_body_ae_forward.1} parent=1 // pred_region
      _
    $region5: #{whole_body_ae_forward.1} parent=1 // pred_fallthru
      _
    // Predicated region
    $region6: #{whole_body_ae_forward.1} parent=1 // pred_check
      _
    $region7: #{whole_body_ae_forward.1} parent=1 // pred_check_branch
      %24 = sbr.rel (0) target = $region9
    $region8: #{whole_body_ae_forward.1} parent=1 // pred_region
      _
    $region9: #{whole_body_ae_forward.1} parent=1 // pred_fallthru
      _
    // Predicated region
    $region10: #{whole_body_ae_forward.1} parent=1 // pred_check
      _
    $region11: #{whole_body_ae_forward.1} parent=1 // pred_check_branch
      %26 = sbr.rel (0) target = $region13
    $region12: #{whole_body_ae_forward.1} parent=1 // pred_region
      _
    $region13: #{whole_body_ae_forward.1} parent=1 // pred_fallthru
      _
    // Predicated region
    $region14: #{whole_body_ae_forward.1} parent=1 // pred_check
      _
    $region15: #{whole_body_ae_forward.1} parent=1 // pred_check_branch
      %28 = sbr.rel (0) target = $region17
    $region16: #{whole_body_ae_forward.1} parent=1 // pred_region
      _
    $region17: #{whole_body_ae_forward.1} parent=1 // pred_fallthru
      _
    // Predicated region
    $region18: #{whole_body_ae_forward.1} parent=1 // pred_check
      _
    $region19: #{whole_body_ae_forward.1} parent=1 // pred_check_branch
      %30 = sbr.rel (0) target = $region21
    $region20: #{whole_body_ae_forward.1} parent=1 // pred_region
      _
    $region21: #{whole_body_ae_forward.1} parent=1 // pred_fallthru
      _
    // Predicated region
    $region22: #{whole_body_ae_forward.1} parent=1 // pred_check
      _
    $region23: #{whole_body_ae_forward.1} parent=1 // pred_check_branch
      %32 = sbr.rel (0) target = $region25
    $region24: #{whole_body_ae_forward.1} parent=1 // pred_region
      _
    $region25: #{whole_body_ae_forward.1} parent=1 // pred_fallthru
      _
    // Predicated region
    $region26: #{whole_body_ae_forward.1} parent=1 // pred_check
      _
    $region27: #{whole_body_ae_forward.1} parent=1 // pred_check_branch
      %34 = sbr.rel (0) target = $region29
    $region28: #{whole_body_ae_forward.1} parent=1 // pred_region
      _
    $region29: #{whole_body_ae_forward.1} parent=1 // pred_fallthru
      _
    // Predicated region
    $region30: #{whole_body_ae_forward.1} parent=1 // pred_check
      _
    $region31: #{whole_body_ae_forward.1} parent=1 // pred_check_branch
      %36 = sbr.rel (0) target = $region33
    $region32: #{whole_body_ae_forward.1} parent=1 // pred_region
      _
    $region33: #{whole_body_ae_forward.1} parent=1 // pred_fallthru
      _
    // Predicated region
    $region34: #{whole_body_ae_forward.1} parent=1 // pred_check
      _
    $region35: #{whole_body_ae_forward.1} parent=1 // pred_check_branch
      %38 = sbr.rel (0) target = $region37
    $region36: #{whole_body_ae_forward.1} parent=1 // pred_region
      _
    $region37: #{whole_body_ae_forward.1} parent=1 // pred_fallthru
      _
    // Predicated region
    $region38: #{whole_body_ae_forward.1} parent=1 // pred_check
      _
    $region39: #{whole_body_ae_forward.1} parent=1 // pred_check_branch
      %40 = sbr.rel (0) target = $region41
    $region40: #{whole_body_ae_forward.1} parent=1 // pred_region
      _
    $region41: #{whole_body_ae_forward.1} parent=1 // pred_fallthru
      _
    // Predicated region
    $region42: #{whole_body_ae_forward.1} parent=1 // pred_check
      _
    $region43: #{whole_body_ae_forward.1} parent=1 // pred_check_branch
      %42 = sbr.rel (0) target = $region45
    $region44: #{whole_body_ae_forward.1} parent=1 // pred_region
      _
    $region45: #{whole_body_ae_forward.1} parent=1 // pred_fallthru
      _
    // Predicated region
    $region46: #{whole_body_ae_forward.1} parent=1 // pred_check
      _
    $region47: #{whole_body_ae_forward.1} parent=1 // pred_check_branch
      %44 = sbr.rel (0) target = $region49
    $region48: #{whole_body_ae_forward.1} parent=1 // pred_region
      _
    $region49: #{whole_body_ae_forward.1} parent=1 // pred_fallthru
      _
    // Predicated region
    $region50: #{whole_body_ae_forward.1} parent=1 // pred_check
      _
    $region51: #{whole_body_ae_forward.1} parent=1 // pred_check_branch
      %46 = sbr.rel (0) target = $region53
    $region52: #{whole_body_ae_forward.1} parent=1 // pred_region
      _
    $region53: #{whole_body_ae_forward.1} parent=1 // pred_fallthru
      _
    // Predicated region
    $region54: #{whole_body_ae_forward.1} parent=1 // pred_check
      _
    $region55: #{whole_body_ae_forward.1} parent=1 // pred_check_branch
      %48 = sbr.rel (0) target = $region57
    $region56: #{whole_body_ae_forward.1} parent=1 // pred_region
      _
    $region57: #{whole_body_ae_forward.1} parent=1 // pred_fallthru
      _
    // Predicated region
    $region58: #{whole_body_ae_forward.1} parent=1 // pred_check
      _
    $region59: #{whole_body_ae_forward.1} parent=1 // pred_check_branch
      %50 = sbr.rel (0) target = $region61
    $region60: #{whole_body_ae_forward.1} parent=1 // pred_region
      _
    $region61: #{whole_body_ae_forward.1} parent=1 // pred_fallthru
      _
    %v51 = vld [vmem:[%s0] sm:$0xff]
    %v52 = vld [vmem:[%s1] sm:$0xff]
    %v53 = vld [vmem:[%s1 + $0x8] sm:$0xff]
    %v54 = vld [vmem:[%s1 + $0x10] sm:$0xff]
    %v55 = vld [vmem:[%s2] sm:$0xff]
    %v56 = vld [vmem:[%s2 + $0x8] sm:$0xff]
    %v57 = vld [vmem:[%s2 + $0x10] sm:$0xff]
    %59 = vset.pattern.permute.xlu0 0
    %60 = vperm.xlu0 %59, %v55
    %v61 = vpop.permute.xlu0 %60
    %64 = vset.pattern.permute.xlu0 0
    %65 = vperm.xlu0 %64, %v56
    %v66 = vpop.permute.xlu0 %65
    %69 = vset.pattern.permute.xlu0 0
    %70 = vperm.xlu0 %69, %v57
    %v71 = vpop.permute.xlu0 %70
    %vm73 = vcmask 343040
    %v75 = vsel %vm73, %v52, 0
    %v78 = vsel %vm73, %v53, 0
    %v81 = vsel %vm73, %v54, 0
    %v84 = vsel %vm73, %v51, 0
    %86 = vmatprep.subr.mxu0 0.0
    %87 = vmatpush1.xpose.msra.mxu0 %v84
    %88 = vmatprep.subr.mxu0 0.0
    %89 = vmatpush1.xpose.msra.mxu0 0.0
    %90 = vmatprep.subr.mxu0 0.0
    %91 = vmatpush1.xpose.msra.mxu0 0.0
    %92 = vmatprep.subr.mxu0 0.0
    %93 = vmatpush1.xpose.msra.mxu0 0.0
    %94 = vmatprep.subr.mxu0 0.0
    %95 = vmatpush1.xpose.msra.mxu0 0.0
    %96 = vmatprep.subr.mxu0 0.0
    %97 = vmatpush1.xpose.msra.mxu0 0.0
    %98 = vmatprep.subr.mxu0 0.0
    %99 = vmatpush1.xpose.msra.mxu0 0.0
    %100 = vmatprep.subr.mxu0 0.0
    %101 = vmatpush1.xpose.msra.mxu0 0.0
    %102 = vmatprep.subr.mxu0 0.0
    %103 = vmatpush1.xpose.msra.mxu0 0.0
    %104 = vmatprep.subr.mxu0 0.0
    %105 = vmatpush1.xpose.msra.mxu0 0.0
    %106 = vmatprep.subr.mxu0 0.0
    %107 = vmatpush1.xpose.msra.mxu0 0.0
    %108 = vmatprep.subr.mxu0 0.0
    %109 = vmatpush1.xpose.msra.mxu0 0.0
    %110 = vmatprep.subr.mxu0 0.0
    %111 = vmatpush1.xpose.msra.mxu0 0.0
    %112 = vmatprep.subr.mxu0 0.0
    %113 = vmatpush1.xpose.msra.mxu0 0.0
    %114 = vmatprep.subr.mxu0 0.0
    %115 = vmatpush1.xpose.msra.mxu0 0.0
    %116 = vmatprep.subr.mxu0 0.0
    %117 = vmatpush1.xpose.msra.mxu0 0.0
    %118 = vmatprep.subr.mxu0 0.0
    %119 = vmatpush1.xpose.msra.mxu0 0.0
    %120 = vmatprep.subr.mxu0 0.0
    %121 = vmatpush1.xpose.msra.mxu0 0.0
    %122 = vmatprep.subr.mxu0 0.0
    %123 = vmatpush1.xpose.msra.mxu0 0.0
    %124 = vmatprep.subr.mxu0 0.0
    %125 = vmatpush1.xpose.msra.mxu0 0.0
    %126 = vmatprep.subr.mxu0 0.0
    %127 = vmatpush1.xpose.msra.mxu0 0.0
    %128 = vmatprep.subr.mxu0 0.0
    %129 = vmatpush1.xpose.msra.mxu0 0.0
    %130 = vmatprep.subr.mxu0 0.0
    %131 = vmatpush1.xpose.msra.mxu0 0.0
    %132 = vmatprep.subr.mxu0 0.0
    %133 = vmatpush1.xpose.msra.mxu0 0.0
    %134 = vmatprep.subr.mxu0 0.0
    %135 = vmatpush1.xpose.msra.mxu0 0.0
    %136 = vmatprep.subr.mxu0 0.0
    %137 = vmatpush1.xpose.msra.mxu0 0.0
    %138 = vmatprep.subr.mxu0 0.0
    %139 = vmatpush1.xpose.msra.mxu0 0.0
    %140 = vmatprep.subr.mxu0 0.0
    %141 = vmatpush1.xpose.msra.mxu0 0.0
    %142 = vmatprep.subr.mxu0 0.0
    %143 = vmatpush1.xpose.msra.mxu0 0.0
    %144 = vmatprep.subr.mxu0 0.0
    %145 = vmatpush1.xpose.msra.mxu0 0.0
    %146 = vmatprep.subr.mxu0 0.0
    %147 = vmatpush1.xpose.msra.mxu0 0.0
    %148 = vmatprep.subr.mxu0 0.0
    %149 = vmatpush1.xpose.msra.mxu0 0.0
    %150 = vmatprep.mubr.f32.mxu0 0.0
    %151 = vmatmul.mubr.f32.gmra.mrb[0].mxu0 %v75
    %v152 = vpop.f32.mrb[0].mxu0
    %v153 = vadd.f32 %v61, %v152
    %v154 = vpop.f32.mrb[0].mxu0
    %155 = vmatprep.mubr.f32.mxu0 0.0
    %156 = vmatmul.mubr.f32.gmra.mrb[0].mxu0 %v78
    %v157 = vpop.f32.mrb[0].mxu0
    %v158 = vadd.f32 %v66, %v157
    %v159 = vpop.f32.mrb[0].mxu0
    %160 = vmatprep.mubr.f32.mxu0 0.0
    %161 = vmatmul.mubr.f32.gmra.mrb[0].mxu0 %v81
    %v162 = vpop.f32.mrb[0].mxu0
    %v163 = vadd.f32 %v71, %v162
    %v164 = vpop.f32.mrb[0].mxu0
    %165 = vdwg.mxu0
    %v166 = vmax.f32 %v153, 0.0
    %v167 = vmax.f32 %v158, 0.0
    %v168 = vmax.f32 %v163, 0.0
    %v169 = vld [vmem:[%s3] sm:$0xff]
    %v170 = vld [vmem:[%s3 + $0x8] sm:$0xf]
    %v171 = vld [vmem:[%s4] sm:$0xff]
    %v172 = vld [vmem:[%s4 + $0x8] sm:$0xf]
    %174 = vset.pattern.permute.xlu0 0
    %175 = vperm.xlu0 %174, %v171
    %v176 = vpop.permute.xlu0 %175
    %179 = vset.pattern.permute.xlu0 0
    %180 = vperm.xlu0 %179, %v172
    %v181 = vpop.permute.xlu0 %180
    %vm183 = vcmask 195584
    %v185 = vsel %vm183, %v169, 0
    %v188 = vsel %vm183, %v170, 0
    %190 = vmatprep.subr.mxu0 0.0
    %191 = vmatpush1.msra.mxu0 %v166
    %192 = vmatprep.subr.mxu0 0.0
    %193 = vmatpush1.msra.mxu0 %v167
    %194 = vmatprep.subr.mxu0 0.0
    %195 = vmatpush1.msra.mxu0 %v168
    %196 = vmatprep.subr.mxu0 0.0
    %197 = vmatpush1.msra.mxu0 0.0
    %198 = vmatprep.subr.mxu0 0.0
    %199 = vmatpush1.msra.mxu0 0.0
    %200 = vmatprep.subr.mxu0 0.0
    %201 = vmatpush1.msra.mxu0 0.0
    %202 = vmatprep.subr.mxu0 0.0
    %203 = vmatpush1.msra.mxu0 0.0
    %204 = vmatprep.subr.mxu0 0.0
    %205 = vmatpush1.msra.mxu0 0.0
    %206 = vmatprep.subr.mxu0 0.0
    %207 = vmatpush1.msra.mxu0 0.0
    %208 = vmatprep.subr.mxu0 0.0
    %209 = vmatpush1.msra.mxu0 0.0
    %210 = vmatprep.subr.mxu0 0.0
    %211 = vmatpush1.msra.mxu0 0.0
    %212 = vmatprep.subr.mxu0 0.0
    %213 = vmatpush1.msra.mxu0 0.0
    %214 = vmatprep.subr.mxu0 0.0
    %215 = vmatpush1.msra.mxu0 0.0
    %216 = vmatprep.subr.mxu0 0.0
    %217 = vmatpush1.msra.mxu0 0.0
    %218 = vmatprep.subr.mxu0 0.0
    %219 = vmatpush1.msra.mxu0 0.0
    %220 = vmatprep.subr.mxu0 0.0
    %221 = vmatpush1.msra.mxu0 0.0
    %222 = vmatprep.subr.mxu0 0.0
    %223 = vmatpush1.msra.mxu0 0.0
    %224 = vmatprep.subr.mxu0 0.0
    %225 = vmatpush1.msra.mxu0 0.0
    %226 = vmatprep.subr.mxu0 0.0
    %227 = vmatpush1.msra.mxu0 0.0
    %228 = vmatprep.subr.mxu0 0.0
    %229 = vmatpush1.msra.mxu0 0.0
    %230 = vmatprep.subr.mxu0 0.0
    %231 = vmatpush1.msra.mxu0 0.0
    %232 = vmatprep.subr.mxu0 0.0
    %233 = vmatpush1.msra.mxu0 0.0
    %234 = vmatprep.subr.mxu0 0.0
    %235 = vmatpush1.msra.mxu0 0.0
    %236 = vmatprep.subr.mxu0 0.0
    %237 = vmatpush1.msra.mxu0 0.0
    %238 = vmatprep.subr.mxu0 0.0
    %239 = vmatpush1.msra.mxu0 0.0
    %240 = vmatprep.subr.mxu0 0.0
    %241 = vmatpush1.msra.mxu0 0.0
    %242 = vmatprep.subr.mxu0 0.0
    %243 = vmatpush1.msra.mxu0 0.0
    %244 = vmatprep.subr.mxu0 0.0
    %245 = vmatpush1.msra.mxu0 0.0
    %246 = vmatprep.subr.mxu0 0.0
    %247 = vmatpush1.msra.mxu0 0.0
    %248 = vmatprep.subr.mxu0 0.0
    %249 = vmatpush1.msra.mxu0 0.0
    %250 = vmatprep.subr.mxu0 0.0
    %251 = vmatpush1.msra.mxu0 0.0
    %252 = vmatprep.subr.mxu0 0.0
    %253 = vmatpush1.msra.mxu0 0.0
    %254 = vmatprep.mubr.f32.mxu0 0.0
    %255 = vmatmul.mubr.f32.gmra.mrb[0].mxu0 %v185
    %v256 = vpop.f32.mrb[0].mxu0
    %v257 = vadd.f32 %v176, %v256
    %v258 = vpop.f32.mrb[0].mxu0
    %259 = vmatprep.mubr.f32.mxu0 0.0
    %260 = vmatmul.mubr.f32.gmra.mrb[0].mxu0 %v188
    %v261 = vpop.f32.mrb[0].mxu0
    %v262 = vadd.f32 %v181, %v261
    %v263 = vpop.f32.mrb[0].mxu0
    %264 = vdwg.mxu0
    %v265 = vmax.f32 %v257, 0.0
    %v266 = vmax.f32 %v262, 0.0
    %v267 = vld [vmem:[%s5] sm:$0x7f]
    %v268 = vld [vmem:[%s6] sm:$0x7f]
    %270 = vset.pattern.permute.xlu0 0
    %271 = vperm.xlu0 %270, %v268
    %v272 = vpop.permute.xlu0 %271
    %vm274 = vcmask 97280
    %v276 = vsel %vm274, %v267, 0
    %vm278 = vcmask 1043456
    %v280 = vsel %vm278, %v266, 0
    %282 = vmatprep.subr.mxu0 0.0
    %283 = vmatpush1.msra.mxu0 %v265
    %284 = vmatprep.subr.mxu0 0.0
    %285 = vmatpush1.msra.mxu0 %v280
    %286 = vmatprep.subr.mxu0 0.0
    %287 = vmatpush1.msra.mxu0 0.0
    %288 = vmatprep.subr.mxu0 0.0
    %289 = vmatpush1.msra.mxu0 0.0
    %290 = vmatprep.subr.mxu0 0.0
    %291 = vmatpush1.msra.mxu0 0.0
    %292 = vmatprep.subr.mxu0 0.0
    %293 = vmatpush1.msra.mxu0 0.0
    %294 = vmatprep.subr.mxu0 0.0
    %295 = vmatpush1.msra.mxu0 0.0
    %296 = vmatprep.subr.mxu0 0.0
    %297 = vmatpush1.msra.mxu0 0.0
    %298 = vmatprep.subr.mxu0 0.0
    %299 = vmatpush1.msra.mxu0 0.0
    %300 = vmatprep.subr.mxu0 0.0
    %301 = vmatpush1.msra.mxu0 0.0
    %302 = vmatprep.subr.mxu0 0.0
    %303 = vmatpush1.msra.mxu0 0.0
    %304 = vmatprep.subr.mxu0 0.0
    %305 = vmatpush1.msra.mxu0 0.0
    %306 = vmatprep.subr.mxu0 0.0
    %307 = vmatpush1.msra.mxu0 0.0
    %308 = vmatprep.subr.mxu0 0.0
    %309 = vmatpush1.msra.mxu0 0.0
    %310 = vmatprep.subr.mxu0 0.0
    %311 = vmatpush1.msra.mxu0 0.0
    %312 = vmatprep.subr.mxu0 0.0
    %313 = vmatpush1.msra.mxu0 0.0
    %314 = vmatprep.subr.mxu0 0.0
    %315 = vmatpush1.msra.mxu0 0.0
    %316 = vmatprep.subr.mxu0 0.0
    %317 = vmatpush1.msra.mxu0 0.0
    %318 = vmatprep.subr.mxu0 0.0
    %319 = vmatpush1.msra.mxu0 0.0
    %320 = vmatprep.subr.mxu0 0.0
    %321 = vmatpush1.msra.mxu0 0.0
    %322 = vmatprep.subr.mxu0 0.0
    %323 = vmatpush1.msra.mxu0 0.0
    %324 = vmatprep.subr.mxu0 0.0
    %325 = vmatpush1.msra.mxu0 0.0
    %326 = vmatprep.subr.mxu0 0.0
    %327 = vmatpush1.msra.mxu0 0.0
    %328 = vmatprep.subr.mxu0 0.0
    %329 = vmatpush1.msra.mxu0 0.0
    %330 = vmatprep.subr.mxu0 0.0
    %331 = vmatpush1.msra.mxu0 0.0
    %332 = vmatprep.subr.mxu0 0.0
    %333 = vmatpush1.msra.mxu0 0.0
    %334 = vmatprep.subr.mxu0 0.0
    %335 = vmatpush1.msra.mxu0 0.0
    %336 = vmatprep.subr.mxu0 0.0
    %337 = vmatpush1.msra.mxu0 0.0
    %338 = vmatprep.subr.mxu0 0.0
    %339 = vmatpush1.msra.mxu0 0.0
    %340 = vmatprep.subr.mxu0 0.0
    %341 = vmatpush1.msra.mxu0 0.0
    %342 = vmatprep.subr.mxu0 0.0
    %343 = vmatpush1.msra.mxu0 0.0
    %344 = vmatprep.subr.mxu0 0.0
    %345 = vmatpush1.msra.mxu0 0.0
    %346 = vmatprep.mubr.f32.mxu0 0.0
    %347 = vmatmul.mubr.f32.gmra.mrb[0].mxu0 %v276
    %v348 = vpop.f32.mrb[0].mxu0
    %v349 = vadd.f32 %v272, %v348
    %v350 = vpop.f32.mrb[0].mxu0
    %351 = vdwg.mxu0
    %v352 = vmax.f32 %v349, 0.0
    %v353 = vld [vmem:[%s7] sm:$0x7f]
    %v354 = vld [vmem:[%s8] sm:$0x7f]
    %356 = vset.pattern.permute.xlu0 0
    %357 = vperm.xlu0 %356, %v354
    %v358 = vpop.permute.xlu0 %357
    %vm360 = vcmask 56320
    %v362 = vsel %vm360, %v353, 0
    %vm364 = vcmask 1046528
    %v366 = vsel %vm364, %v352, 0
    %368 = vmatprep.subr.mxu0 0.0
    %369 = vmatpush1.msra.mxu0 %v366
    %370 = vmatprep.subr.mxu0 0.0
    %371 = vmatpush1.msra.mxu0 0.0
    %372 = vmatprep.subr.mxu0 0.0
    %373 = vmatpush1.msra.mxu0 0.0
    %374 = vmatprep.subr.mxu0 0.0
    %375 = vmatpush1.msra.mxu0 0.0
    %376 = vmatprep.subr.mxu0 0.0
    %377 = vmatpush1.msra.mxu0 0.0
    %378 = vmatprep.subr.mxu0 0.0
    %379 = vmatpush1.msra.mxu0 0.0
    %380 = vmatprep.subr.mxu0 0.0
    %381 = vmatpush1.msra.mxu0 0.0
    %382 = vmatprep.subr.mxu0 0.0
    %383 = vmatpush1.msra.mxu0 0.0
    %384 = vmatprep.subr.mxu0 0.0
    %385 = vmatpush1.msra.mxu0 0.0
    %386 = vmatprep.subr.mxu0 0.0
    %387 = vmatpush1.msra.mxu0 0.0
    %388 = vmatprep.subr.mxu0 0.0
    %389 = vmatpush1.msra.mxu0 0.0
    %390 = vmatprep.subr.mxu0 0.0
    %391 = vmatpush1.msra.mxu0 0.0
    %392 = vmatprep.subr.mxu0 0.0
    %393 = vmatpush1.msra.mxu0 0.0
    %394 = vmatprep.subr.mxu0 0.0
    %395 = vmatpush1.msra.mxu0 0.0
    %396 = vmatprep.subr.mxu0 0.0
    %397 = vmatpush1.msra.mxu0 0.0
    %398 = vmatprep.subr.mxu0 0.0
    %399 = vmatpush1.msra.mxu0 0.0
    %400 = vmatprep.subr.mxu0 0.0
    %401 = vmatpush1.msra.mxu0 0.0
    %402 = vmatprep.subr.mxu0 0.0
    %403 = vmatpush1.msra.mxu0 0.0
    %404 = vmatprep.subr.mxu0 0.0
    %405 = vmatpush1.msra.mxu0 0.0
    %406 = vmatprep.subr.mxu0 0.0
    %407 = vmatpush1.msra.mxu0 0.0
    %408 = vmatprep.subr.mxu0 0.0
    %409 = vmatpush1.msra.mxu0 0.0
    %410 = vmatprep.subr.mxu0 0.0
    %411 = vmatpush1.msra.mxu0 0.0
    %412 = vmatprep.subr.mxu0 0.0
    %413 = vmatpush1.msra.mxu0 0.0
    %414 = vmatprep.subr.mxu0 0.0
    %415 = vmatpush1.msra.mxu0 0.0
    %416 = vmatprep.subr.mxu0 0.0
    %417 = vmatpush1.msra.mxu0 0.0
    %418 = vmatprep.subr.mxu0 0.0
    %419 = vmatpush1.msra.mxu0 0.0
    %420 = vmatprep.subr.mxu0 0.0
    %421 = vmatpush1.msra.mxu0 0.0
    %422 = vmatprep.subr.mxu0 0.0
    %423 = vmatpush1.msra.mxu0 0.0
    %424 = vmatprep.subr.mxu0 0.0
    %425 = vmatpush1.msra.mxu0 0.0
    %426 = vmatprep.subr.mxu0 0.0
    %427 = vmatpush1.msra.mxu0 0.0
    %428 = vmatprep.subr.mxu0 0.0
    %429 = vmatpush1.msra.mxu0 0.0
    %430 = vmatprep.subr.mxu0 0.0
    %431 = vmatpush1.msra.mxu0 0.0
    %432 = vmatprep.mubr.f32.mxu0 0.0
    %433 = vmatmul.mubr.f32.gmra.mrb[0].mxu0 %v362
    %v434 = vpop.f32.mrb[0].mxu0
    %v435 = vadd.f32 %v358, %v434
    %v436 = vpop.f32.mrb[0].mxu0
    %437 = vdwg.mxu0
    %v438 = vmax.f32 %v435, 0.0
    %v439 = vld [vmem:[%s9] sm:$0xff]
    %v440 = vld [vmem:[%s9 + $0x8] sm:$0xf]
    %v441 = vld [vmem:[%s10] sm:$0xff]
    %v442 = vld [vmem:[%s10 + $0x8] sm:$0xf]
    %444 = vset.pattern.permute.xlu0 0
    %445 = vperm.xlu0 %444, %v441
    %v446 = vpop.permute.xlu0 %445
    %449 = vset.pattern.permute.xlu0 0
    %450 = vperm.xlu0 %449, %v442
    %v451 = vpop.permute.xlu0 %450
    %v454 = vsel %vm360, %v439, 0
    %v457 = vsel %vm360, %v440, 0
    %v460 = vsel %vm364, %v438, 0
    %462 = vmatprep.subr.mxu0 0.0
    %463 = vmatpush1.msra.mxu0 %v460
    %464 = vmatprep.subr.mxu0 0.0
    %465 = vmatpush1.msra.mxu0 0.0
    %466 = vmatprep.subr.mxu0 0.0
    %467 = vmatpush1.msra.mxu0 0.0
    %468 = vmatprep.subr.mxu0 0.0
    %469 = vmatpush1.msra.mxu0 0.0
    %470 = vmatprep.subr.mxu0 0.0
    %471 = vmatpush1.msra.mxu0 0.0
    %472 = vmatprep.subr.mxu0 0.0
    %473 = vmatpush1.msra.mxu0 0.0
    %474 = vmatprep.subr.mxu0 0.0
    %475 = vmatpush1.msra.mxu0 0.0
    %476 = vmatprep.subr.mxu0 0.0
    %477 = vmatpush1.msra.mxu0 0.0
    %478 = vmatprep.subr.mxu0 0.0
    %479 = vmatpush1.msra.mxu0 0.0
    %480 = vmatprep.subr.mxu0 0.0
    %481 = vmatpush1.msra.mxu0 0.0
    %482 = vmatprep.subr.mxu0 0.0
    %483 = vmatpush1.msra.mxu0 0.0
    %484 = vmatprep.subr.mxu0 0.0
    %485 = vmatpush1.msra.mxu0 0.0
    %486 = vmatprep.subr.mxu0 0.0
    %487 = vmatpush1.msra.mxu0 0.0
    %488 = vmatprep.subr.mxu0 0.0
    %489 = vmatpush1.msra.mxu0 0.0
    %490 = vmatprep.subr.mxu0 0.0
    %491 = vmatpush1.msra.mxu0 0.0
    %492 = vmatprep.subr.mxu0 0.0
    %493 = vmatpush1.msra.mxu0 0.0
    %494 = vmatprep.subr.mxu0 0.0
    %495 = vmatpush1.msra.mxu0 0.0
    %496 = vmatprep.subr.mxu0 0.0
    %497 = vmatpush1.msra.mxu0 0.0
    %498 = vmatprep.subr.mxu0 0.0
    %499 = vmatpush1.msra.mxu0 0.0
    %500 = vmatprep.subr.mxu0 0.0
    %501 = vmatpush1.msra.mxu0 0.0
    %502 = vmatprep.subr.mxu0 0.0
    %503 = vmatpush1.msra.mxu0 0.0
    %504 = vmatprep.subr.mxu0 0.0
    %505 = vmatpush1.msra.mxu0 0.0
    %506 = vmatprep.subr.mxu0 0.0
    %507 = vmatpush1.msra.mxu0 0.0
    %508 = vmatprep.subr.mxu0 0.0
    %509 = vmatpush1.msra.mxu0 0.0
    %510 = vmatprep.subr.mxu0 0.0
    %511 = vmatpush1.msra.mxu0 0.0
    %512 = vmatprep.subr.mxu0 0.0
    %513 = vmatpush1.msra.mxu0 0.0
    %514 = vmatprep.subr.mxu0 0.0
    %515 = vmatpush1.msra.mxu0 0.0
    %516 = vmatprep.subr.mxu0 0.0
    %517 = vmatpush1.msra.mxu0 0.0
    %518 = vmatprep.subr.mxu0 0.0
    %519 = vmatpush1.msra.mxu0 0.0
    %520 = vmatprep.subr.mxu0 0.0
    %521 = vmatpush1.msra.mxu0 0.0
    %522 = vmatprep.subr.mxu0 0.0
    %523 = vmatpush1.msra.mxu0 0.0
    %524 = vmatprep.subr.mxu0 0.0
    %525 = vmatpush1.msra.mxu0 0.0
    %526 = vmatprep.mubr.f32.mxu0 0.0
    %527 = vmatmul.mubr.f32.gmra.mrb[0].mxu0 %v454
    %v528 = vpop.f32.mrb[0].mxu0
    %v529 = vadd.f32 %v446, %v528
    %v530 = vpop.f32.mrb[0].mxu0
    %531 = vmatprep.mubr.f32.mxu0 0.0
    %532 = vmatmul.mubr.f32.gmra.mrb[0].mxu0 %v457
    %v533 = vpop.f32.mrb[0].mxu0
    %v534 = vadd.f32 %v451, %v533
    %v535 = vpop.f32.mrb[0].mxu0
    %536 = vdwg.mxu0
    %v537 = vmax.f32 %v529, 0.0
    %v538 = vmax.f32 %v534, 0.0
    %v539 = vld [vmem:[%s11] sm:$0xff]
    %v540 = vld [vmem:[%s11 + $0x8] sm:$0xff]
    %v541 = vld [vmem:[%s11 + $0x10] sm:$0xff]
    %v542 = vld [vmem:[%s12] sm:$0xff]
    %v543 = vld [vmem:[%s12 + $0x8] sm:$0xff]
    %v544 = vld [vmem:[%s12 + $0x10] sm:$0xff]
    %546 = vset.pattern.permute.xlu0 0
    %547 = vperm.xlu0 %546, %v542
    %v548 = vpop.permute.xlu0 %547
    %551 = vset.pattern.permute.xlu0 0
    %552 = vperm.xlu0 %551, %v543
    %v553 = vpop.permute.xlu0 %552
    %556 = vset.pattern.permute.xlu0 0
    %557 = vperm.xlu0 %556, %v544
    %v558 = vpop.permute.xlu0 %557
    %v561 = vsel %vm274, %v539, 0
    %v564 = vsel %vm274, %v540, 0
    %v567 = vsel %vm274, %v541, 0
    %v570 = vsel %vm278, %v538, 0
    %572 = vmatprep.subr.mxu0 0.0
    %573 = vmatpush1.msra.mxu0 %v537
    %574 = vmatprep.subr.mxu0 0.0
    %575 = vmatpush1.msra.mxu0 %v570
    %576 = vmatprep.subr.mxu0 0.0
    %577 = vmatpush1.msra.mxu0 0.0
    %578 = vmatprep.subr.mxu0 0.0
    %579 = vmatpush1.msra.mxu0 0.0
    %580 = vmatprep.subr.mxu0 0.0
    %581 = vmatpush1.msra.mxu0 0.0
    %582 = vmatprep.subr.mxu0 0.0
    %583 = vmatpush1.msra.mxu0 0.0
    %584 = vmatprep.subr.mxu0 0.0
    %585 = vmatpush1.msra.mxu0 0.0
    %586 = vmatprep.subr.mxu0 0.0
    %587 = vmatpush1.msra.mxu0 0.0
    %588 = vmatprep.subr.mxu0 0.0
    %589 = vmatpush1.msra.mxu0 0.0
    %590 = vmatprep.subr.mxu0 0.0
    %591 = vmatpush1.msra.mxu0 0.0
    %592 = vmatprep.subr.mxu0 0.0
    %593 = vmatpush1.msra.mxu0 0.0
    %594 = vmatprep.subr.mxu0 0.0
    %595 = vmatpush1.msra.mxu0 0.0
    %596 = vmatprep.subr.mxu0 0.0
    %597 = vmatpush1.msra.mxu0 0.0
    %598 = vmatprep.subr.mxu0 0.0
    %599 = vmatpush1.msra.mxu0 0.0
    %600 = vmatprep.subr.mxu0 0.0
    %601 = vmatpush1.msra.mxu0 0.0
    %602 = vmatprep.subr.mxu0 0.0
    %603 = vmatpush1.msra.mxu0 0.0
    %604 = vmatprep.subr.mxu0 0.0
    %605 = vmatpush1.msra.mxu0 0.0
    %606 = vmatprep.subr.mxu0 0.0
    %607 = vmatpush1.msra.mxu0 0.0
    %608 = vmatprep.subr.mxu0 0.0
    %609 = vmatpush1.msra.mxu0 0.0
    %610 = vmatprep.subr.mxu0 0.0
    %611 = vmatpush1.msra.mxu0 0.0
    %612 = vmatprep.subr.mxu0 0.0
    %613 = vmatpush1.msra.mxu0 0.0
    %614 = vmatprep.subr.mxu0 0.0
    %615 = vmatpush1.msra.mxu0 0.0
    %616 = vmatprep.subr.mxu0 0.0
    %617 = vmatpush1.msra.mxu0 0.0
    %618 = vmatprep.subr.mxu0 0.0
    %619 = vmatpush1.msra.mxu0 0.0
    %620 = vmatprep.subr.mxu0 0.0
    %621 = vmatpush1.msra.mxu0 0.0
    %622 = vmatprep.subr.mxu0 0.0
    %623 = vmatpush1.msra.mxu0 0.0
    %624 = vmatprep.subr.mxu0 0.0
    %625 = vmatpush1.msra.mxu0 0.0
    %626 = vmatprep.subr.mxu0 0.0
    %627 = vmatpush1.msra.mxu0 0.0
    %628 = vmatprep.subr.mxu0 0.0
    %629 = vmatpush1.msra.mxu0 0.0
    %630 = vmatprep.subr.mxu0 0.0
    %631 = vmatpush1.msra.mxu0 0.0
    %632 = vmatprep.subr.mxu0 0.0
    %633 = vmatpush1.msra.mxu0 0.0
    %634 = vmatprep.subr.mxu0 0.0
    %635 = vmatpush1.msra.mxu0 0.0
    %636 = vmatprep.mubr.f32.mxu0 0.0
    %637 = vmatmul.mubr.f32.gmra.mrb[0].mxu0 %v561
    %v638 = vpop.f32.mrb[0].mxu0
    %v639 = vadd.f32 %v548, %v638
    %v640 = vpop.f32.mrb[0].mxu0
    %641 = vmatprep.mubr.f32.mxu0 0.0
    %642 = vmatmul.mubr.f32.gmra.mrb[0].mxu0 %v564
    %v643 = vpop.f32.mrb[0].mxu0
    %v644 = vadd.f32 %v553, %v643
    %v645 = vpop.f32.mrb[0].mxu0
    %646 = vmatprep.mubr.f32.mxu0 0.0
    %647 = vmatmul.mubr.f32.gmra.mrb[0].mxu0 %v567
    %v648 = vpop.f32.mrb[0].mxu0
    %v649 = vadd.f32 %v558, %v648
    %v650 = vpop.f32.mrb[0].mxu0
    %651 = vdwg.mxu0
    %v652 = vmax.f32 %v639, 0.0
    %v653 = vmax.f32 %v644, 0.0
    %v654 = vmax.f32 %v649, 0.0
    %v655 = vld [vmem:[%s13] sm:$0xff]
    %v656 = vld [vmem:[%s13 + $0x8] sm:$0xff]
    %v657 = vld [vmem:[%s13 + $0x10] sm:$0xff]
    %v658 = vld [vmem:[%s14] sm:$0x1]
    %v660 = vlaneseq
    %v661 = vshrl.u32 %v660, 7
    %v662 = vsub.s32 0, %v661
    %v663 = vrot.slane %v658, %v662
    %665 = vxpose.xlu0.b32.start [1/16] %v652, 128
    %666 = vxpose.xlu0.b32.cont [2/16] %v653, 128
    %667 = vxpose.xlu0.b32.cont [3/16] %v654, 128
    %668 = vxpose.xlu0.b32.cont [4/16] 0.0, 128
    %669 = vxpose.xlu0.b32.cont [5/16] 0.0, 128
    %670 = vxpose.xlu0.b32.cont [6/16] 0.0, 128
    %671 = vxpose.xlu0.b32.cont [7/16] 0.0, 128
    %672 = vxpose.xlu0.b32.cont [8/16] 0.0, 128
    %673 = vxpose.xlu0.b32.cont [9/16] 0.0, 128
    %674 = vxpose.xlu0.b32.cont [10/16] 0.0, 128
    %675 = vxpose.xlu0.b32.cont [11/16] 0.0, 128
    %676 = vxpose.xlu0.b32.cont [12/16] 0.0, 128
    %677 = vxpose.xlu0.b32.cont [13/16] 0.0, 128
    %678 = vxpose.xlu0.b32.cont [14/16] 0.0, 128
    %679 = vxpose.xlu0.b32.cont [15/16] 0.0, 128
    %680 = vxpose.xlu0.b32.end [16/16] 0.0, 128
    %v681 = vpop.trf.xlu0
    %v682 = vpop.trf.xlu0
    %v683 = vpop.trf.xlu0
    %v684 = vpop.trf.xlu0
    %v685 = vpop.trf.xlu0
    %v686 = vpop.trf.xlu0
    %v687 = vpop.trf.xlu0
    %v688 = vpop.trf.xlu0
    %v689 = vpop.trf.xlu0
    %v690 = vpop.trf.xlu0
    %v691 = vpop.trf.xlu0
    %v692 = vpop.trf.xlu0
    %v693 = vpop.trf.xlu0
    %v694 = vpop.trf.xlu0
    %v695 = vpop.trf.xlu0
    %v696 = vpop.trf.xlu0
    %v698 = vsel %vm183, %v681, 0
    %700 = vmatprep.subr.mxu0 0.0
    %701 = vmatpush1.msra.mxu0 %v655
    %702 = vmatprep.subr.mxu0 0.0
    %703 = vmatpush1.msra.mxu0 %v656
    %704 = vmatprep.subr.mxu0 0.0
    %705 = vmatpush1.msra.mxu0 %v657
    %706 = vmatprep.subr.mxu0 0.0
    %707 = vmatpush1.msra.mxu0 0.0
    %708 = vmatprep.subr.mxu0 0.0
    %709 = vmatpush1.msra.mxu0 0.0
    %710 = vmatprep.subr.mxu0 0.0
    %711 = vmatpush1.msra.mxu0 0.0
    %712 = vmatprep.subr.mxu0 0.0
    %713 = vmatpush1.msra.mxu0 0.0
    %714 = vmatprep.subr.mxu0 0.0
    %715 = vmatpush1.msra.mxu0 0.0
    %716 = vmatprep.subr.mxu0 0.0
    %717 = vmatpush1.msra.mxu0 0.0
    %718 = vmatprep.subr.mxu0 0.0
    %719 = vmatpush1.msra.mxu0 0.0
    %720 = vmatprep.subr.mxu0 0.0
    %721 = vmatpush1.msra.mxu0 0.0
    %722 = vmatprep.subr.mxu0 0.0
    %723 = vmatpush1.msra.mxu0 0.0
    %724 = vmatprep.subr.mxu0 0.0
    %725 = vmatpush1.msra.mxu0 0.0
    %726 = vmatprep.subr.mxu0 0.0
    %727 = vmatpush1.msra.mxu0 0.0
    %728 = vmatprep.subr.mxu0 0.0
    %729 = vmatpush1.msra.mxu0 0.0
    %730 = vmatprep.subr.mxu0 0.0
    %731 = vmatpush1.msra.mxu0 0.0
    %732 = vmatprep.subr.mxu0 0.0
    %733 = vmatpush1.msra.mxu0 0.0
    %734 = vmatprep.subr.mxu0 0.0
    %735 = vmatpush1.msra.mxu0 0.0
    %736 = vmatprep.subr.mxu0 0.0
    %737 = vmatpush1.msra.mxu0 0.0
    %738 = vmatprep.subr.mxu0 0.0
    %739 = vmatpush1.msra.mxu0 0.0
    %740 = vmatprep.subr.mxu0 0.0
    %741 = vmatpush1.msra.mxu0 0.0
    %742 = vmatprep.subr.mxu0 0.0
    %743 = vmatpush1.msra.mxu0 0.0
    %744 = vmatprep.subr.mxu0 0.0
    %745 = vmatpush1.msra.mxu0 0.0
    %746 = vmatprep.subr.mxu0 0.0
    %747 = vmatpush1.msra.mxu0 0.0
    %748 = vmatprep.subr.mxu0 0.0
    %749 = vmatpush1.msra.mxu0 0.0
    %750 = vmatprep.subr.mxu0 0.0
    %751 = vmatpush1.msra.mxu0 0.0
    %752 = vmatprep.subr.mxu0 0.0
    %753 = vmatpush1.msra.mxu0 0.0
    %754 = vmatprep.subr.mxu0 0.0
    %755 = vmatpush1.msra.mxu0 0.0
    %756 = vmatprep.subr.mxu0 0.0
    %757 = vmatpush1.msra.mxu0 0.0
    %758 = vmatprep.subr.mxu0 0.0
    %759 = vmatpush1.msra.mxu0 0.0
    %760 = vmatprep.subr.mxu0 0.0
    %761 = vmatpush1.msra.mxu0 0.0
    %762 = vmatprep.subr.mxu0 0.0
    %763 = vmatpush1.msra.mxu0 0.0
    %764 = vmatprep.mubr.f32.mxu0 0.0
    %765 = vmatmul.mubr.f32.gmra.mrb[0].mxu0 %v698
    %v766 = vpop.f32.mrb[0].mxu0
    %v767 = vadd.f32 %v663, %v766
    %v768 = vpop.f32.mrb[0].mxu0
    %769 = vdwg.mxu0
    %v770 = vxor.u32 %v767, 2147483648
    %v771 = vmul.f32 %v770, 1.442695
    %v772 = vpow.pop %v771
    %v773 = vadd.f32 %v772, 1.0
    %v774 = vrcp.pop %v773
    %v775 = vmul.f32 1.0, %v774
    %776 = vst.msk [vmem:[#allocation2] sm:$0xff] %vm73, %v775
    // Predicated region
    $region62: #{whole_body_ae_forward.1} parent=1 // pred_check
      _
    $region63: #{whole_body_ae_forward.1} parent=1 // pred_check_branch
      %778 = sbr.rel (0) target = $region65
    $region64: #{whole_body_ae_forward.1} parent=1 // pred_region
      %s780 = ssub.s32 128, 128
      %781 = vsyncadd [#allocation3], %s780
      %s783 = sshll.u32 [#allocation2], 4
      %s784 = int_to_ptr.vmem [resolvable:$true] %s783
      %786 = dma.vmem_to_hbm [thread:$0]  %s784, 128, %s15, [#allocation3]
    $region65: #{whole_body_ae_forward.1} parent=1 // pred_fallthru
      _
    // Predicated region
    $region66: #{whole_body_ae_forward.1} parent=1 // pred_check
      _
    $region67: #{whole_body_ae_forward.1} parent=1 // pred_check_branch
      %788 = sbr.rel (0) target = $region69
    $region68: #{whole_body_ae_forward.1} parent=1 // pred_region
      %789 = dma.done [#allocation3], 128
    $region69: #{whole_body_ae_forward.1} parent=1 // pred_fallthru
      _
    %790 = vsyncpa [#allocation3], 1

</llo_original>
